<compile_context>
chip_gen: v7x
topology: tpu7x:2x2x1
jax: 0.10.0
libtpu: 0.0.40
codegen_flags: <defaults>
</compile_context>

<pallas_src>
import functools

import jax
import jax.numpy as jnp
from jax import lax
from jax.experimental import pallas as pl
from jax.experimental.pallas import tpu as pltpu

LN_EPS = 1e-5   # PyTorch nn.LayerNorm default
LANE = 128      # lane-dense padded output width


# ----------------------------- VMEM sizing helpers -----------------------------

def _vmem_limit_bytes():
    """Per-call VMEM cap derived from the chip (v5e/v6e: 128 MiB phys, v7x: 64 MiB)."""
    cap = 64 * 1024 * 1024                      # conservative fallback = v7x physical
    try:
        info = pltpu.get_tpu_info()
        cap = int(getattr(info, "vmem_capacity_bytes", cap) or cap)
    except Exception:
        pass
    return int(min(cap * 3 // 4, 96 * 1024 * 1024))


def _pair_row_tile(n_res, c_z, out_ch, vmem_limit):
    """Largest row tile for the pair-bias launch that (a) exactly divides N*N,
    (b) keeps the double-buffered z(f32)/out(bf16) blocks within ~half the VMEM cap,
    and (c) satisfies the (8,128) layout rule (multiple of 128 or the full extent)."""
    rows = n_res * n_res
    per_row = 2 * (4 * c_z) + 2 * (2 * out_ch)   # f32 z x2 buffers + bf16 out x2 buffers
    budget_rows = max(n_res, (vmem_limit // 2) // per_row)
    if rows <= budget_rows:
        return rows
    best = None
    for k in range(1, n_res + 1):
        if n_res % k:
            continue
        t = n_res * k
        if t <= budget_rows and t % 128 == 0:
            best = t
    return best if best is not None else rows    # correctness over perf fallback


# ----------------------------- Pallas kernels -----------------------------

def _layernorm(x, g, b):
    mu = jnp.mean(x, axis=-1, keepdims=True)
    var = jnp.mean((x - mu) ** 2, axis=-1, keepdims=True)
    return (x - mu) * lax.rsqrt(var + LN_EPS) * g + b


def ln_in_kernel(x_ref, g_ref, b_ref, w_ref, wb_ref, ln_ref, o_ref):
    # layer_norm_s + linear_in, two outputs (s_initial and s) from one launch.
    # TODO(synk): if production c_s < 128, fold residues into lanes here for
    # lane-dense stores (non-issue when c_s >= 128).
    xn = _layernorm(x_ref[...], g_ref[...], b_ref[...])
    ln_ref[...] = xn
    o_ref[...] = jnp.dot(xn, w_ref[...], preferred_element_type=jnp.float32) + wb_ref[...]


def pair_bias_kernel(z_ref, g_ref, b_ref, w_ref, bias_ref, o_ref):
    # layer_norm_z + linear_b, output written channel-major (nb*H, rows) in bf16
    # via a transposed contraction on the MXU -> no XLA transpose afterwards.
    zn = _layernorm(z_ref[0], g_ref[...], b_ref[...])                 # (rows, c_z) f32
    ot = lax.dot_general(w_ref[...], zn, (((0,), (1,)), ((), ())),
                         preferred_element_type=jnp.float32)          # (nb*H, rows)
    o_ref[0] = (ot + bias_ref[...]).astype(o_ref.dtype)               # bf16 store


def fused_block_kernel(
    s0_ref, bias_ref, mask_ref,
    aln_g_ref, aln_b_ref, wqkv_ref, wg_ref, bg_ref, wo_ref, bo_ref,
    tln_g_ref, tln_b_ref, w1_ref, b1_ref, w2_ref, b2_ref,
    o_ref, *, num_heads, head_dim, neg_inf,
):
    # One structure block per grid step: s <- s + Attn(s); s <- s + MLP(s).
    # s stays resident in o_ref (output index_map is k-invariant, nb axis is
    # "arbitrary").  NOTE: changing either of those would silently corrupt results.
    # s0_ref / mask_ref index_maps are also k-invariant, so Pallas skips re-fetching
    # them across the nb steps.
    @pl.when(pl.program_id(1) == 0)
    def _():
        o_ref[...] = s0_ref[...]

    D = num_heads * head_dim
    n = o_ref.shape[1]
    s = o_ref[0]                                        # (N, D)
    xn = _layernorm(s, aln_g_ref[0], aln_b_ref[0])      # (N, D)

    # fused QKV projection: columns ordered [Q heads | K heads | V heads]
    qkv = jnp.dot(xn, wqkv_ref[0], preferred_element_type=jnp.float32)    # (N, 3D)
    gate = jax.nn.sigmoid(
        jnp.dot(xn, wg_ref[0], preferred_element_type=jnp.float32) + bg_ref[0])

    scale = head_dim ** (-0.5)
    # Additive key-mask bias, materialized ONCE as (N, N): avoids H broadcasts +
    # selects per block (JAX does not CSE broadcast_in_dim).  Finite large-negative
    # so fully-masked rows give a uniform distribution instead of NaN.
    mask_bias = jnp.broadcast_to(
        jnp.where(mask_ref[0] == 0.0, neg_inf, 0.0), (n, n))

    # Per-head scores + softmax; head outputs assembled once, gated once, and pushed
    # through a single (N, D) @ (D, c_s) o-projection (no K=hd accumulating matmuls).
    # TODO(synk): longer term, lay out QKV so per-head q/k/v are sublane-blocked
    # rather than lane-sliced when head_dim stays tiny.
    heads = []
    for h in range(num_heads):
        q = qkv[:, h * head_dim:(h + 1) * head_dim] * scale
        k = qkv[:, D + h * head_dim:D + (h + 1) * head_dim]
        v = qkv[:, 2 * D + h * head_dim:2 * D + (h + 1) * head_dim]
        a = lax.dot_general(q, k, (((1,), (1,)), ((), ())),
                            preferred_element_type=jnp.float32)          # (N, N)
        a = a + bias_ref[0, 0, h].astype(jnp.float32) + mask_bias
        a = a - jnp.max(a, axis=-1, keepdims=True)
        e = jnp.exp(a)
        p = e * pl.reciprocal(jnp.sum(e, axis=-1, keepdims=True), approx=True)
        heads.append(jnp.dot(p, v, preferred_element_type=jnp.float32))  # (N, hd)
    y = jnp.concatenate(heads, axis=-1)                 # (N, D), '(h c)' order as in torch
    y = gate * y
    s = s + jnp.dot(y, wo_ref[0], preferred_element_type=jnp.float32) + bo_ref[0]

    # transition: s = s + Linear(ReLU(Linear(LN(s))))
    tn = _layernorm(s, tln_g_ref[0], tln_b_ref[0])
    h1 = jnp.maximum(
        jnp.dot(tn, w1_ref[0], preferred_element_type=jnp.float32) + b1_ref[0], 0.0)
    s = s + jnp.dot(h1, w2_ref[0], preferred_element_type=jnp.float32) + b2_ref[0]

    o_ref[0] = s


def angle_bb_kernel(
    s_ref, si_ref, w_in_ref, b_in_ref, w_init_ref, b_init_ref,
    wb1_ref, bb1_ref, wb2_ref, bb2_ref, w_out_ref, b_out_ref,
    w_bb_ref, b_bb_ref,
    packed_ref, *, no_blocks, epsilon, na2,
):
    # Angle resnet + bb_update, single packed 128-lane output:
    #   lanes [0:na2)        unnormalized angles
    #   lanes [na2:2*na2)    normalized angles
    #   lanes [2*na2:2*na2+9) backbone update (w_bb padded there directly)
    relu = lambda t: jnp.maximum(t, 0.0)
    s_in = s_ref[...]

    si = relu(si_ref[...])
    si = jnp.dot(si, w_init_ref[...], preferred_element_type=jnp.float32) + b_init_ref[...]
    a = relu(s_in)
    a = jnp.dot(a, w_in_ref[...], preferred_element_type=jnp.float32) + b_in_ref[...]
    a = a + si
    for i in range(no_blocks):
        h = relu(a)
        h = jnp.dot(h, wb1_ref[i], preferred_element_type=jnp.float32) + bb1_ref[i]
        h = relu(h)
        h = jnp.dot(h, wb2_ref[i], preferred_element_type=jnp.float32) + bb2_ref[i]
        a = a + h
    a = relu(a)

    # linear_out with weights padded to 128 lanes (cols [0:na2)); padded lanes stay 0.
    un = jnp.dot(a, w_out_ref[...], preferred_element_type=jnp.float32) + b_out_ref[...]

    # per-angle (sin, cos) L2 normalization via XLU lane rotates (pairs are adjacent).
    lanes = un.shape[-1]
    sq = un * un
    nxt = pltpu.roll(sq, lanes - 1, axis=1)   # sq[i+1] at lane i
    prv = pltpu.roll(sq, 1, axis=1)           # sq[i-1] at lane i
    lane = lax.broadcasted_iota(jnp.int32, sq.shape, 1)
    sumsq = sq + jnp.where(lane % 2 == 0, nxt, prv)
    ang = un * lax.rsqrt(jnp.maximum(sumsq, epsilon))   # zero on padded lanes

    # bb_update fused in; w_bb padded at cols [2*na2 : 2*na2+9) so it lands in place.
    bb = jnp.dot(s_in, w_bb_ref[...], preferred_element_type=jnp.float32) + b_bb_ref[...]

    # pack: un occupies lanes [0:na2), rolled ang occupies [na2:2*na2), bb [2*na2:+9).
    packed_ref[...] = un + pltpu.roll(ang, na2, axis=1) + bb


# ----------------------------- rigid-frame geometry (plain JAX glue) -----------------------------
# TODO(synk): rigid-frame math (Gram-Schmidt, torsion frame composition, atom14 placement)
# is gather-heavy 3x3 arithmetic with no TPU-tile-friendly hot path; kept in plain JAX.

def rot_matmul(a, b):
    return jnp.einsum("...ij,...jk->...ik", a, b)


def rot_vec_mul(r, t):
    return jnp.einsum("...ij,...j->...i", r, t)


def make_transform_from_reference(n_xyz, ca_xyz, c_xyz, eps=1e-7):
    n_xyz = n_xyz - ca_xyz
    c_xyz = c_xyz - ca_xyz
    c_x, c_y, c_z = c_xyz[..., 0], c_xyz[..., 1], c_xyz[..., 2]
    zeros = jnp.zeros_like(c_x)
    ones = jnp.ones_like(c_x)

    norm = jnp.sqrt(eps + c_x**2 + c_y**2)
    sin_c1, cos_c1 = -c_y / norm, c_x / norm
    c1_rots = jnp.stack(
        [cos_c1, -sin_c1, zeros, sin_c1, cos_c1, zeros, zeros, zeros, ones], axis=-1
    ).reshape(c_x.shape + (3, 3))

    norm = jnp.sqrt(eps + c_x**2 + c_y**2 + c_z**2)
    sin_c2 = c_z / norm
    cos_c2 = jnp.sqrt(c_x**2 + c_y**2) / norm
    c2_rots = jnp.stack(
        [cos_c2, zeros, sin_c2, zeros, ones, zeros, -sin_c2, zeros, cos_c2], axis=-1
    ).reshape(c_x.shape + (3, 3))

    c_rots = rot_matmul(c2_rots, c1_rots)
    n_xyz = rot_vec_mul(c_rots, n_xyz)
    n_y, n_z = n_xyz[..., 1], n_xyz[..., 2]
    norm = jnp.sqrt(eps + n_y**2 + n_z**2)
    sin_n, cos_n = -n_z / norm, n_y / norm
    n_rots = jnp.stack(
        [ones, zeros, zeros, zeros, cos_n, -sin_n, zeros, sin_n, cos_n], axis=-1
    ).reshape(c_x.shape + (3, 3))

    rots = jnp.swapaxes(rot_matmul(n_rots, c_rots), -1, -2)
    return rots, ca_xyz


def rigid_compose(r1, t1, r2, t2):
    return rot_matmul(r1, r2), rot_vec_mul(r1, t2) + t1


def torsion_angles_to_frames(r_rot, r_trans, alpha, aatype, rrgdf):
    default_4x4 = rrgdf[aatype]               # (B, N, 8, 4, 4)
    d_rot = default_4x4[..., :3, :3]
    d_trans = default_4x4[..., :3, 3]

    bb_rot = jnp.zeros(alpha.shape[:-2] + (1, 2), alpha.dtype).at[..., 1].set(1.0)
    alpha = jnp.concatenate([bb_rot, alpha], axis=-2)      # (B, N, 8, 2)
    sin_a, cos_a = alpha[..., 0], alpha[..., 1]
    zeros = jnp.zeros_like(sin_a)
    ones = jnp.ones_like(sin_a)
    a_rot = jnp.stack(
        [ones, zeros, zeros, zeros, cos_a, -sin_a, zeros, sin_a, cos_a], axis=-1
    ).reshape(sin_a.shape + (3, 3))

    af_rot = rot_matmul(d_rot, a_rot)
    af_trans = d_trans

    def frame(i):
        return af_rot[..., i, :, :], af_trans[..., i, :]

    chi1_rot, chi1_t = frame(4)
    chi2_rot, chi2_t = rigid_compose(chi1_rot, chi1_t, *frame(5))
    chi3_rot, chi3_t = rigid_compose(chi2_rot, chi2_t, *frame(6))
    chi4_rot, chi4_t = rigid_compose(chi3_rot, chi3_t, *frame(7))

    all_rot = jnp.concatenate(
        [af_rot[..., :5, :, :], chi2_rot[..., None, :, :],
         chi3_rot[..., None, :, :], chi4_rot[..., None, :, :]], axis=-3)
    all_t = jnp.concatenate(
        [af_trans[..., :5, :], chi2_t[..., None, :],
         chi3_t[..., None, :], chi4_t[..., None, :]], axis=-2)

    g_rot = rot_matmul(r_rot[..., None, :, :], all_rot)
    g_t = rot_vec_mul(r_rot[..., None, :, :], all_t) + r_trans[..., None, :]
    return g_rot, g_t


def frames_to_atom14(g_rot, g_t, aatype, group_idx, atom_mask, lit_positions):
    n_frames = g_rot.shape[-3]
    group_mask = jax.nn.one_hot(group_idx[aatype], n_frames, dtype=g_rot.dtype)  # (B,N,14,8)
    rot_atoms = jnp.einsum("...fij,...af->...aij", g_rot, group_mask)
    t_atoms = jnp.einsum("...fi,...af->...ai", g_t, group_mask)
    lit = lit_positions[aatype]
    pred = rot_vec_mul(rot_atoms, lit) + t_atoms
    return pred * atom_mask[aatype][..., None]


def to_tensor_4x4(rot, trans):
    out = jnp.zeros(rot.shape[:-2] + (4, 4), rot.dtype)
    out = out.at[..., :3, :3].set(rot)
    out = out.at[..., :3, 3].set(trans)
    out = out.at[..., 3, 3].set(1.0)
    return out


# ----------------------------- StructureModule forward -----------------------------

def structure_module_forward(params, buffers, s, z, aatype, mask, cfg):
    B, N, c_s = s.shape
    c_z = z.shape[-1]
    nb, H, hd = cfg["no_blocks"], cfg["no_heads"], cfg["head_dim"]
    na = cfg["no_angles"]
    c_res = cfg["c_resnet"]
    vmem_limit = _vmem_limit_bytes()
    cp = pltpu.CompilerParams(vmem_limit_bytes=vmem_limit)

    # ---- layer_norm_s + linear_in (one launch, two outputs) ----
    s_flat = s.reshape(B * N, c_s)
    s_initial, s_cur = pl.pallas_call(
        ln_in_kernel,
        out_shape=(jax.ShapeDtypeStruct((B * N, c_s), jnp.float32),
                   jax.ShapeDtypeStruct((B * N, c_s), jnp.float32)),
        compiler_params=cp,
    )(s_flat, params["ln_s_g"].reshape(1, c_s), params["ln_s_b"].reshape(1, c_s),
      params["w_in"], params["b_in"].reshape(1, c_s))

    # ---- layer_norm_z + linear_b -> channel-major bf16 bias, VMEM-budgeted row tile ----
    rows = N * N
    row_tile = _pair_row_tile(N, c_z, nb * H, vmem_limit)   # exact divisor of rows
    z_flat = z.reshape(B, rows, c_z)
    bias_ce = pl.CostEstimate(
        flops=int(2 * B * rows * c_z * nb * H),
        transcendentals=0,
        bytes_accessed=int(4 * B * rows * c_z + 2 * B * nb * H * rows + 4 * c_z * nb * H))
    b_t = pl.pallas_call(
        pair_bias_kernel,
        out_shape=jax.ShapeDtypeStruct((B, nb * H, rows), jnp.bfloat16),
        grid=(B, rows // row_tile),
        in_specs=[
            pl.BlockSpec((1, row_tile, c_z), lambda b, r: (b, r, 0)),
            pl.BlockSpec((1, c_z), lambda b, r: (0, 0)),
            pl.BlockSpec((1, c_z), lambda b, r: (0, 0)),
            pl.BlockSpec((c_z, nb * H), lambda b, r: (0, 0)),
            pl.BlockSpec((nb * H, 1), lambda b, r: (0, 0)),
        ],
        out_specs=pl.BlockSpec((1, nb * H, row_tile), lambda b, r: (b, 0, r)),
        compiler_params=pltpu.CompilerParams(
            dimension_semantics=("parallel", "parallel"),
            vmem_limit_bytes=vmem_limit),
        cost_estimate=bias_ce,
    )(z_flat, params["ln_z_g"].reshape(1, c_z), params["ln_z_b"].reshape(1, c_z),
      params["w_b"], params["b_b"].reshape(nb * H, 1))
    # contiguous split -> metadata-only reshape, no HBM permute pass
    bias = b_t.reshape(B, nb, H, N, N)       # bf16

    # ---- all structure blocks fused: grid=(B, nb), s resident in output VMEM block ----
    # TODO(synk): for v7x at very large N, stream the bias per head (memory_space=pl.ANY
    # + manual double buffering) instead of one (1,1,H,N,N) block; bf16 storage already
    # halves the per-step bias block.
    ap, tp = params["attn"], params["trans"]
    attn_flops = (2 * N * c_s * 3 * c_s + 2 * N * c_s * c_s
                  + H * (4 * N * N * hd) + 2 * N * c_s * c_s)
    trans_flops = 4 * N * c_s * c_s
    blk_ce = pl.CostEstimate(
        flops=int(B * nb * (attn_flops + trans_flops)),
        transcendentals=int(B * nb * N * (H * N + c_s)),
        bytes_accessed=int(4 * 2 * B * N * c_s + 2 * B * nb * H * N * N + 4 * B * N
                           + 4 * nb * (7 * c_s * c_s + 8 * c_s)))
    pbk = lambda b, k: (k, 0, 0)       # per-block stacked params
    pbt = lambda b, k: (b, 0, 0)       # per-batch, block-invariant (not re-fetched per k)

    kernel = functools.partial(fused_block_kernel, num_heads=H, head_dim=hd,
                               neg_inf=-float(cfg["inf"]))
    s3 = pl.pallas_call(
        kernel,
        out_shape=jax.ShapeDtypeStruct((B, N, c_s), jnp.float32),
        grid=(B, nb),
        in_specs=[
            pl.BlockSpec((1, N, c_s), pbt),                               # s after linear_in
            pl.BlockSpec((1, 1, H, N, N), lambda b, k: (b, k, 0, 0, 0)),  # pair bias (bf16)
            pl.BlockSpec((1, 1, N), pbt),                                 # mask
            pl.BlockSpec((1, 1, c_s), pbk),                               # attn LN gamma
            pl.BlockSpec((1, 1, c_s), pbk),                               # attn LN beta
            pl.BlockSpec((1, c_s, 3 * c_s), pbk),                         # fused QKV weight
            pl.BlockSpec((1, c_s, c_s), pbk),                             # gate weight
            pl.BlockSpec((1, 1, c_s), pbk),                               # gate bias
            pl.BlockSpec((1, c_s, c_s), pbk),                             # o-proj weight
            pl.BlockSpec((1, 1, c_s), pbk),                               # o-proj bias
            pl.BlockSpec((1, 1, c_s), pbk),                               # transition LN gamma
            pl.BlockSpec((1, 1, c_s), pbk),                               # transition LN beta
            pl.BlockSpec((1, c_s, c_s), pbk),                             # transition w1
            pl.BlockSpec((1, 1, c_s), pbk),                               # transition b1
            pl.BlockSpec((1, c_s, c_s), pbk),                             # transition w2
            pl.BlockSpec((1, 1, c_s), pbk),                               # transition b2
        ],
        out_specs=pl.BlockSpec((1, N, c_s), pbt),
        compiler_params=pltpu.CompilerParams(
            dimension_semantics=("parallel", "arbitrary"),
            vmem_limit_bytes=vmem_limit),
        cost_estimate=blk_ce,
    )(s_cur.reshape(B, N, c_s), bias, mask.reshape(B, 1, N),
      ap["ln_g"], ap["ln_b"], ap["wqkv"], ap["wg"], ap["bg"], ap["wo"], ap["bo"],
      tp["ln_g"], tp["ln_b"], tp["w1"], tp["b1"], tp["w2"], tp["b2"])

    # ---- angle resnet + bb_update fused; one packed 128-lane output ----
    ar = params["angle"]
    na2 = na * 2
    bb_off = 2 * na2
    assert bb_off + 9 <= LANE
    w_out_pad = jnp.zeros((c_res, LANE), jnp.float32).at[:, :na2].set(ar["w_out"])
    b_out_pad = jnp.zeros((1, LANE), jnp.float32).at[:, :na2].set(ar["b_out"].reshape(1, na2))
    w_bb_pad = jnp.zeros((c_s, LANE), jnp.float32).at[:, bb_off:bb_off + 9].set(params["w_bb"])
    b_bb_pad = jnp.zeros((1, LANE), jnp.float32).at[:, bb_off:bb_off + 9].set(
        params["b_bb"].reshape(1, 9))

    packed = pl.pallas_call(
        functools.partial(angle_bb_kernel, no_blocks=cfg["no_resnet_blocks"],
                          epsilon=cfg["epsilon"], na2=na2),
        out_shape=jax.ShapeDtypeStruct((B * N, LANE), jnp.float32),
        compiler_params=cp,
    )(s3.reshape(B * N, c_s), s_initial,
      ar["w_in"], ar["b_in"].reshape(1, c_res),
      ar["w_init"], ar["b_init"].reshape(1, c_res),
      ar["wb1"], ar["bb1"], ar["wb2"], ar["bb2"],
      w_out_pad, b_out_pad, w_bb_pad, b_bb_pad)

    unnormalized_angles = packed[:, :na2].reshape(B, N, na, 2)
    angles = packed[:, na2:2 * na2].reshape(B, N, na, 2)
    bb = packed[:, bb_off:bb_off + 9].reshape(B, N, 9)

    # ---- frames / atom placement (plain JAX glue) ----
    n_xyz, ca_xyz, c_xyz = bb[..., 0:3], bb[..., 3:6], bb[..., 6:9]
    rot, trans = make_transform_from_reference(n_xyz, ca_xyz, c_xyz, eps=1e-7)
    trans = trans * cfg["trans_scale_factor"]

    g_rot, g_t = torsion_angles_to_frames(rot, trans, angles, aatype,
                                          buffers["default_frames"])
    pred_xyz = frames_to_atom14(g_rot, g_t, aatype, buffers["group_idx"],
                                buffers["atom_mask"], buffers["lit_positions"])

    outputs = {
        "angles": angles[None],
        "unnormalized_angles": unnormalized_angles[None],
        "frames": to_tensor_4x4(rot, trans)[None],
        "sidechain_frames": to_tensor_4x4(g_rot, g_t)[None],
        "positions": pred_xyz[None],
        "states": s3[None],
        "single": s3,
    }
    return outputs


# ----------------------------- deterministic parameter / buffer init -----------------------------

def init_params(key, cfg):
    c_s, c_z = cfg["c_s"], cfg["c_z"]
    nb, H, hd = cfg["no_blocks"], cfg["no_heads"], cfg["head_dim"]
    c_res, nrb, na = cfg["c_resnet"], cfg["no_resnet_blocks"], cfg["no_angles"]
    keys = iter(jax.random.split(key, 128))

    def w(shape, scale=0.05):
        return jax.random.normal(next(keys), shape, jnp.float32) * scale

    params = {
        "ln_s_g": jnp.ones((c_s,), jnp.float32), "ln_s_b": jnp.zeros((c_s,), jnp.float32),
        "ln_z_g": jnp.ones((c_z,), jnp.float32), "ln_z_b": jnp.zeros((c_z,), jnp.float32),
        "w_in": w((c_s, c_s)), "b_in": jnp.zeros((c_s,), jnp.float32),
        "w_b": w((c_z, nb * H)), "b_b": jnp.zeros((nb * H,), jnp.float32),
        "w_bb": w((c_s, 9)), "b_bb": jnp.zeros((9,), jnp.float32),
    }

    # per-block attention / transition params, stacked along a leading nb axis so
    # the fused block kernel can select block i via its index_map.
    wqkv_blocks = []
    for _ in range(nb):
        # torch proj column packing is '(h (3 c))'; re-pack to [Q heads | K heads | V heads]
        wq3 = w((c_s, 3 * c_s)).reshape(c_s, H, 3, hd)
        wqkv_blocks.append(jnp.transpose(wq3, (0, 2, 1, 3)).reshape(c_s, 3 * c_s))
    params["attn"] = {
        "ln_g": jnp.ones((nb, 1, c_s), jnp.float32),
        "ln_b": jnp.zeros((nb, 1, c_s), jnp.float32),
        "wqkv": jnp.stack(wqkv_blocks),
        "wg": jnp.stack([w((c_s, c_s)) for _ in range(nb)]),
        "bg": jnp.ones((nb, 1, c_s), jnp.float32),
        "wo": jnp.stack([w((c_s, c_s)) for _ in range(nb)]),
        "bo": jnp.zeros((nb, 1, c_s), jnp.float32),
    }
    params["trans"] = {
        "ln_g": jnp.ones((nb, 1, c_s), jnp.float32),
        "ln_b": jnp.zeros((nb, 1, c_s), jnp.float32),
        "w1": jnp.stack([w((c_s, c_s)) for _ in range(nb)]),
        "b1": jnp.zeros((nb, 1, c_s), jnp.float32),
        "w2": jnp.stack([w((c_s, c_s)) for _ in range(nb)]),
        "b2": jnp.zeros((nb, 1, c_s), jnp.float32),
    }
    params["angle"] = {
        "w_in": w((c_s, c_res)), "b_in": jnp.zeros((c_res,), jnp.float32),
        "w_init": w((c_s, c_res)), "b_init": jnp.zeros((c_res,), jnp.float32),
        "wb1": w((nrb, c_res, c_res)), "bb1": jnp.zeros((nrb, 1, c_res), jnp.float32),
        "wb2": w((nrb, c_res, c_res)), "bb2": jnp.zeros((nrb, 1, c_res), jnp.float32),
        "w_out": w((c_res, na * 2)), "b_out": jnp.zeros((na * 2,), jnp.float32),
    }
    return params


def init_buffers():
    frames = jnp.tile(jnp.eye(4, dtype=jnp.float32), (21, 8, 1, 1))
    tr = (jnp.sin(jnp.arange(21 * 8 * 3, dtype=jnp.float32)) * 0.1).reshape(21, 8, 3)
    frames = frames.at[..., :3, 3].set(tr)
    group_idx = (jnp.arange(21 * 14) % 8).reshape(21, 14).astype(jnp.int32)
    atom_mask = ((jnp.arange(21 * 14) % 5) != 0).astype(jnp.float32).reshape(21, 14)
    lit_positions = (jnp.cos(jnp.arange(21 * 14 * 3, dtype=jnp.float32)) * 0.5).reshape(21, 14, 3)
    return {"default_frames": frames, "group_idx": group_idx,
            "atom_mask": atom_mask, "lit_positions": lit_positions}


# ----------------------------- main -----------------------------

if __name__ == "__main__":
    cfg = dict(c_s=32, c_z=16, c_resnet=32, head_dim=8, no_heads=4, no_blocks=2,
               no_resnet_blocks=2, no_angles=7, trans_scale_factor=10.0,
               epsilon=1e-8, inf=1e5)
    B, N = 2, 8

    key = jax.random.PRNGKey(0)
    k_s, k_z, k_aa, k_p = jax.random.split(key, 4)
    s = jax.random.normal(k_s, (B, N, cfg["c_s"]), jnp.float32)
    z = jax.random.normal(k_z, (B, N, N, cfg["c_z"]), jnp.float32)
    aatype = jax.random.randint(k_aa, (B, N), 0, 21)
    mask = jnp.ones((B, N), jnp.float32).at[0, N - 1].set(0.0).at[1, 0].set(0.0)

    params = init_params(k_p, cfg)
    buffers = init_buffers()

    out = structure_module_forward(params, buffers, s, z, aatype, mask, cfg)
    out = jax.block_until_ready(out)

    assert out["angles"].shape == (1, B, N, cfg["no_angles"], 2)
    assert out["unnormalized_angles"].shape == (1, B, N, cfg["no_angles"], 2)
    assert out["frames"].shape == (1, B, N, 4, 4)
    assert out["sidechain_frames"].shape == (1, B, N, 8, 4, 4)
    assert out["positions"].shape == (1, B, N, 14, 3)
    assert out["states"].shape == (1, B, N, cfg["c_s"])
    assert out["single"].shape == (B, N, cfg["c_s"])
    assert all(bool(jnp.all(jnp.isfinite(v))) for v in jax.tree_util.tree_leaves(out))

    print("KERNEL_OK")
</pallas_src>

<mosaic_0001>
module attributes {stable_mosaic.version = 11 : i64} {
  func.func @ln_in_kernel(%arg0: memref<16x32xf32, #tpu.memory_space<vmem>>, %arg1: memref<1x32xf32, #tpu.memory_space<vmem>>, %arg2: memref<1x32xf32, #tpu.memory_space<vmem>>, %arg3: memref<32x32xf32, #tpu.memory_space<vmem>>, %arg4: memref<1x32xf32, #tpu.memory_space<vmem>>, %arg5: memref<16x32xf32, #tpu.memory_space<vmem>>, %arg6: memref<16x32xf32, #tpu.memory_space<vmem>>) attributes {dimension_semantics = [], scalar_prefetch = 0 : i64, scratch_operands = 0 : i64, tpu.core_type = #tpu.core_type<tc>} {
    %c0 = arith.constant 0 : index
    %c0_0 = arith.constant 0 : index
    %0 = vector.load %arg0[%c0, %c0_0] : memref<16x32xf32, #tpu.memory_space<vmem>>, vector<16x32xf32>
    %c0_1 = arith.constant 0 : index
    %c0_2 = arith.constant 0 : index
    %1 = vector.load %arg1[%c0_1, %c0_2] : memref<1x32xf32, #tpu.memory_space<vmem>>, vector<1x32xf32>
    %c0_3 = arith.constant 0 : index
    %c0_4 = arith.constant 0 : index
    %2 = vector.load %arg2[%c0_3, %c0_4] : memref<1x32xf32, #tpu.memory_space<vmem>>, vector<1x32xf32>
    %cst = arith.constant dense<0.000000e+00> : vector<16xf32>
    %3 = vector.multi_reduction <add>, %0, %cst [1] : vector<16x32xf32> to vector<16xf32>
    %4 = vector.shape_cast %3 : vector<16xf32> to vector<16x1xf32>
    %cst_5 = arith.constant 3.200000e+01 : f32
    %5 = vector.broadcast %cst_5 : f32 to vector<16x1xf32>
    %6 = arith.divf %4, %5 : vector<16x1xf32>
    %7 = vector.broadcast %6 : vector<16x1xf32> to vector<16x32xf32>
    %8 = arith.subf %0, %7 : vector<16x32xf32>
    %9 = arith.mulf %8, %8 : vector<16x32xf32>
    %cst_6 = arith.constant dense<0.000000e+00> : vector<16xf32>
    %10 = vector.multi_reduction <add>, %9, %cst_6 [1] : vector<16x32xf32> to vector<16xf32>
    %11 = vector.shape_cast %10 : vector<16xf32> to vector<16x1xf32>
    %cst_7 = arith.constant 3.200000e+01 : f32
    %12 = vector.broadcast %cst_7 : f32 to vector<16x1xf32>
    %13 = arith.divf %11, %12 : vector<16x1xf32>
    %14 = vector.broadcast %6 : vector<16x1xf32> to vector<16x32xf32>
    %15 = arith.subf %0, %14 : vector<16x32xf32>
    %cst_8 = arith.constant 9.99999974E-6 : f32
    %16 = vector.broadcast %cst_8 : f32 to vector<16x1xf32>
    %17 = arith.addf %13, %16 : vector<16x1xf32>
    %18 = math.rsqrt %17 : vector<16x1xf32>
    %19 = vector.broadcast %18 : vector<16x1xf32> to vector<16x32xf32>
    %20 = arith.mulf %15, %19 : vector<16x32xf32>
    %21 = vector.broadcast %1 : vector<1x32xf32> to vector<16x32xf32>
    %22 = arith.mulf %20, %21 : vector<16x32xf32>
    %23 = vector.broadcast %2 : vector<1x32xf32> to vector<16x32xf32>
    %24 = arith.addf %22, %23 : vector<16x32xf32>
    %c0_9 = arith.constant 0 : index
    %c0_10 = arith.constant 0 : index
    %25 = vector.load %arg5[%c0_9, %c0_10] : memref<16x32xf32, #tpu.memory_space<vmem>>, vector<16x32xf32>
    tpu.vector_store %arg5[%c0_9, %c0_10], %24 {strides = array<i32>} : memref<16x32xf32, #tpu.memory_space<vmem>>, vector<16x32xf32>,
    %c0_11 = arith.constant 0 : index
    %c0_12 = arith.constant 0 : index
    %26 = vector.load %arg3[%c0_11, %c0_12] : memref<32x32xf32, #tpu.memory_space<vmem>>, vector<32x32xf32>
    %cst_13 = arith.constant dense<0.000000e+00> : vector<16x32xf32>
    %27 = tpu.matmul %24, %26, %cst_13 {dimension_numbers = #tpu.dot_dimension_numbers<[1], [0], [0], [1], [0, 0, 1, 1], [], []>} : vector<16x32xf32>, vector<32x32xf32>, vector<16x32xf32> -> vector<16x32xf32>
    %c0_14 = arith.constant 0 : index
    %c0_15 = arith.constant 0 : index
    %28 = vector.load %arg4[%c0_14, %c0_15] : memref<1x32xf32, #tpu.memory_space<vmem>>, vector<1x32xf32>
    %29 = vector.broadcast %28 : vector<1x32xf32> to vector<16x32xf32>
    %30 = arith.addf %27, %29 : vector<16x32xf32>
    %c0_16 = arith.constant 0 : index
    %c0_17 = arith.constant 0 : index
    %31 = vector.load %arg6[%c0_16, %c0_17] : memref<16x32xf32, #tpu.memory_space<vmem>>, vector<16x32xf32>
    tpu.vector_store %arg6[%c0_16, %c0_17], %30 {strides = array<i32>} : memref<16x32xf32, #tpu.memory_space<vmem>>, vector<16x32xf32>,
    return
  }
}

</mosaic_0001>

<llo_original>
// kernel: tpu_custom_call.1
$region0: #{tpu_custom_call.1}
  #allocation0 [shape = 'u32[]', space=smem, size = 0x4, offset = 0x4, fixed_abs, tag = 'smem constant byte address 0x4 - core index']
  #allocation1 [shape = 'u32[144,128]{1,0:T(1,128)}', space=vmem, size = 0x12000, scoped, tag = 'internal scratch']
  %s0 = inlined_call_operand.hbm [shape: f32[16,32], index: 0, kind: input, shape index: {}]
  %s1 = inlined_call_operand.vmem [shape: f32[1,32], index: 1, kind: input, shape index: {}]
  %s2 = inlined_call_operand.vmem [shape: f32[1,32], index: 2, kind: input, shape index: {}]
  %s3 = inlined_call_operand.hbm [shape: f32[32,32], index: 3, kind: input, shape index: {}]
  %s4 = inlined_call_operand.vmem [shape: f32[1,32], index: 4, kind: input, shape index: {}]
  %s5 = inlined_call_operand.hbm [shape: f32[16,32], index: 5, kind: output, shape index: {0}]
  %s6 = inlined_call_operand.hbm [shape: f32[16,32], index: 6, kind: output, shape index: {1}]
  %7 = xla_tuple %s5, %s6
  %s8 = sld [smem:[#allocation0]]
  $region46: #{tpu_custom_call.1} parent=0
    _
  %s10 = ssub.s32 1, %s8
  %s11 = scalar_select 0, %s10, %s8
  $region1: #{tpu_custom_call.1} parent=0
    #allocation2 [shape = 'u8[8192]{0}', space=vmem, size = 0x2000, scoped, tag = 'input window, operand 0, single buffered']
    #allocation3 [shape = 's32[1]{0}', space=sflag, size = 0x4, scoped, tag = 'scoped memory for tpu_custom_call.1']
    #allocation4 [shape = 's32[1]{0}', space=sflag, size = 0x4, scoped, tag = 'scoped memory for tpu_custom_call.1']
    #allocation5 [shape = 'u8[16384]{0}', space=vmem, size = 0x4000, scoped, tag = 'input window, operand 3, single buffered']
    #allocation6 [shape = 's32[1]{0}', space=sflag, size = 0x4, scoped, tag = 'scoped memory for tpu_custom_call.1']
    #allocation7 [shape = 'u8[8192]{0}', space=vmem, size = 0x2000, scoped, tag = 'output window, operand 0, single buffered']
    #allocation8 [shape = 'u8[8192]{0}', space=vmem, size = 0x2000, scoped, tag = 'output window, operand 1, single buffered']
    #allocation9 [shape = 's32[1]{0}', space=sflag, size = 0x4, scoped, tag = 'scoped memory for tpu_custom_call.1']
    %12 = vsyncpa [#allocation3], 0
    %13 = vsyncpa [#allocation6], 0
    %14 = vsyncpa [#allocation4], 0
    %15 = vsyncpa [#allocation9], 0
    // Predicated region
    $region2: #{tpu_custom_call.1} parent=1 // pred_check
      _
    $region3: #{tpu_custom_call.1} parent=1 // pred_check_branch
      %17 = sbr.rel (0) target = $region5
    $region4: #{tpu_custom_call.1} parent=1 // pred_region
      %s19 = ssub.s32 256, 256
      %20 = vsyncadd [#allocation3], %s19
      %s21 = sshll.u32 [#allocation2], 4
      %s22 = int_to_ptr.vmem [resolvable:$true] %s21
      %27 = dma.hbm_to_vmem [thread:$0]  %s0, 256, %s22, [#allocation3], 128, 128, 8
    $region5: #{tpu_custom_call.1} parent=1 // pred_fallthru
      _
    // Predicated region
    $region6: #{tpu_custom_call.1} parent=1 // pred_check
      _
    $region7: #{tpu_custom_call.1} parent=1 // pred_check_branch
      %29 = sbr.rel (0) target = $region9
    $region8: #{tpu_custom_call.1} parent=1 // pred_region
      _
    $region9: #{tpu_custom_call.1} parent=1 // pred_fallthru
      _
    // Predicated region
    $region10: #{tpu_custom_call.1} parent=1 // pred_check
      _
    $region11: #{tpu_custom_call.1} parent=1 // pred_check_branch
      %31 = sbr.rel (0) target = $region13
    $region12: #{tpu_custom_call.1} parent=1 // pred_region
      _
    $region13: #{tpu_custom_call.1} parent=1 // pred_fallthru
      _
    // Predicated region
    $region14: #{tpu_custom_call.1} parent=1 // pred_check
      _
    $region15: #{tpu_custom_call.1} parent=1 // pred_check_branch
      %33 = sbr.rel (0) target = $region17
    $region16: #{tpu_custom_call.1} parent=1 // pred_region
      %s35 = ssub.s32 512, 512
      %36 = vsyncadd [#allocation6], %s35
      %s37 = sshll.u32 [#allocation5], 4
      %s38 = int_to_ptr.vmem [resolvable:$true] %s37
      %43 = dma.hbm_to_vmem [thread:$0]  %s3, 512, %s38, [#allocation6], 128, 128, 8
    $region17: #{tpu_custom_call.1} parent=1 // pred_fallthru
      _
    // Predicated region
    $region18: #{tpu_custom_call.1} parent=1 // pred_check
      _
    $region19: #{tpu_custom_call.1} parent=1 // pred_check_branch
      %45 = sbr.rel (0) target = $region21
    $region20: #{tpu_custom_call.1} parent=1 // pred_region
      _
    $region21: #{tpu_custom_call.1} parent=1 // pred_fallthru
      _
    // Predicated region
    $region22: #{tpu_custom_call.1} parent=1 // pred_check
      _
    $region23: #{tpu_custom_call.1} parent=1 // pred_check_branch
      %47 = sbr.rel (0) target = $region25
    $region24: #{tpu_custom_call.1} parent=1 // pred_region
      %48 = dma.done [#allocation3], 256
    $region25: #{tpu_custom_call.1} parent=1 // pred_fallthru
      _
    // Predicated region
    $region26: #{tpu_custom_call.1} parent=1 // pred_check
      _
    $region27: #{tpu_custom_call.1} parent=1 // pred_check_branch
      %50 = sbr.rel (0) target = $region29
    $region28: #{tpu_custom_call.1} parent=1 // pred_region
      %51 = dma.done [#allocation6], 512
    $region29: #{tpu_custom_call.1} parent=1 // pred_fallthru
      _
    %v52 = vld [vmem:[#allocation2] sm:$0xff]
    %v53 = vld [vmem:[#allocation2 + $0x8] sm:$0xff]
    %v54 = vld [vmem:[%s1] sm:$0x1]
    %v55 = vld [vmem:[%s2] sm:$0x1]
    %vm56 = vcmask 261120
    %v57 = vsel %vm56, %v52, 0.0
    %58 = vadd.xlane.f32.xlu0 %v57
    %v59 = vpop.xlane.xlu0 %58
    %v60 = vsel %vm56, %v53, 0.0
    %61 = vadd.xlane.f32.xlu0 %v60
    %v62 = vpop.xlane.xlu0 %61
    %v63 = vrcp.pop 32.0
    %v64 = vmul.f32 %v59, %v63
    %v65 = vmul.f32 %v62, %v63
    %v66 = vsub.f32 %v52, %v64
    %v67 = vsub.f32 %v53, %v65
    %v68 = vmul.f32 %v66, %v66
    %v69 = vmul.f32 %v67, %v67
    %v70 = vsel %vm56, %v68, 0.0
    %71 = vadd.xlane.f32.xlu0 %v70
    %v72 = vpop.xlane.xlu0 %71
    %v73 = vsel %vm56, %v69, 0.0
    %74 = vadd.xlane.f32.xlu0 %v73
    %v75 = vpop.xlane.xlu0 %74
    %v76 = vmul.f32 %v72, %v63
    %v77 = vmul.f32 %v75, %v63
    %v78 = vadd.f32 %v76, 1e-05
    %v79 = vadd.f32 %v77, 1e-05
    %v80 = vrsqrt.pop %v78
    %v81 = vrsqrt.pop %v79
    %v82 = vmul.f32 %v66, %v80
    %v83 = vmul.f32 %v67, %v81
    %v85 = vlaneseq
    %v86 = vshrl.u32 %v85, 7
    %v87 = vsub.s32 0, %v86
    %v88 = vrot.slane %v54, %v87
    %v90 = vmul.f32 %v82, %v88
    %v91 = vmul.f32 %v83, %v88
    %v93 = vlaneseq
    %v94 = vshrl.u32 %v93, 7
    %v95 = vsub.s32 0, %v94
    %v96 = vrot.slane %v55, %v95
    %v98 = vadd.f32 %v90, %v96
    %v99 = vadd.f32 %v91, %v96
    %100 = vst.msk [vmem:[#allocation7] sm:$0xff] %vm56, %v98
    %101 = vst.msk [vmem:[#allocation7 + $0x8] sm:$0xff] %vm56, %v99
    %v102 = vld [vmem:[#allocation5] sm:$0xff]
    %v103 = vld [vmem:[#allocation5 + $0x8] sm:$0xff]
    %v104 = vld [vmem:[#allocation5 + $0x10] sm:$0xff]
    %v105 = vld [vmem:[#allocation5 + $0x18] sm:$0xff]
    %v106 = vld [vmem:[%s4] sm:$0x1]
    %v108 = vlaneseq
    %v109 = vshrl.u32 %v108, 7
    %v110 = vsub.s32 0, %v109
    %v111 = vrot.slane %v106, %v110
    %v114 = vsel %vm56, %v98, 0
    %v117 = vsel %vm56, %v99, 0
    %119 = vmatprep.subr.mxu0 0.0
    %120 = vmatpush1.msra.mxu0 %v102
    %121 = vmatprep.subr.mxu0 0.0
    %122 = vmatpush1.msra.mxu0 %v103
    %123 = vmatprep.subr.mxu0 0.0
    %124 = vmatpush1.msra.mxu0 %v104
    %125 = vmatprep.subr.mxu0 0.0
    %126 = vmatpush1.msra.mxu0 %v105
    %127 = vmatprep.subr.mxu0 0.0
    %128 = vmatpush1.msra.mxu0 0.0
    %129 = vmatprep.subr.mxu0 0.0
    %130 = vmatpush1.msra.mxu0 0.0
    %131 = vmatprep.subr.mxu0 0.0
    %132 = vmatpush1.msra.mxu0 0.0
    %133 = vmatprep.subr.mxu0 0.0
    %134 = vmatpush1.msra.mxu0 0.0
    %135 = vmatprep.subr.mxu0 0.0
    %136 = vmatpush1.msra.mxu0 0.0
    %137 = vmatprep.subr.mxu0 0.0
    %138 = vmatpush1.msra.mxu0 0.0
    %139 = vmatprep.subr.mxu0 0.0
    %140 = vmatpush1.msra.mxu0 0.0
    %141 = vmatprep.subr.mxu0 0.0
    %142 = vmatpush1.msra.mxu0 0.0
    %143 = vmatprep.subr.mxu0 0.0
    %144 = vmatpush1.msra.mxu0 0.0
    %145 = vmatprep.subr.mxu0 0.0
    %146 = vmatpush1.msra.mxu0 0.0
    %147 = vmatprep.subr.mxu0 0.0
    %148 = vmatpush1.msra.mxu0 0.0
    %149 = vmatprep.subr.mxu0 0.0
    %150 = vmatpush1.msra.mxu0 0.0
    %151 = vmatprep.subr.mxu0 0.0
    %152 = vmatpush1.msra.mxu0 0.0
    %153 = vmatprep.subr.mxu0 0.0
    %154 = vmatpush1.msra.mxu0 0.0
    %155 = vmatprep.subr.mxu0 0.0
    %156 = vmatpush1.msra.mxu0 0.0
    %157 = vmatprep.subr.mxu0 0.0
    %158 = vmatpush1.msra.mxu0 0.0
    %159 = vmatprep.subr.mxu0 0.0
    %160 = vmatpush1.msra.mxu0 0.0
    %161 = vmatprep.subr.mxu0 0.0
    %162 = vmatpush1.msra.mxu0 0.0
    %163 = vmatprep.subr.mxu0 0.0
    %164 = vmatpush1.msra.mxu0 0.0
    %165 = vmatprep.subr.mxu0 0.0
    %166 = vmatpush1.msra.mxu0 0.0
    %167 = vmatprep.subr.mxu0 0.0
    %168 = vmatpush1.msra.mxu0 0.0
    %169 = vmatprep.subr.mxu0 0.0
    %170 = vmatpush1.msra.mxu0 0.0
    %171 = vmatprep.subr.mxu0 0.0
    %172 = vmatpush1.msra.mxu0 0.0
    %173 = vmatprep.subr.mxu0 0.0
    %174 = vmatpush1.msra.mxu0 0.0
    %175 = vmatprep.subr.mxu0 0.0
    %176 = vmatpush1.msra.mxu0 0.0
    %177 = vmatprep.subr.mxu0 0.0
    %178 = vmatpush1.msra.mxu0 0.0
    %179 = vmatprep.subr.mxu0 0.0
    %180 = vmatpush1.msra.mxu0 0.0
    %181 = vmatprep.subr.mxu0 0.0
    %182 = vmatpush1.msra.mxu0 0.0
    %183 = vmatprep.mubr.f32.mxu0 0.0
    %184 = vmatmul.mubr.f32.gmra.mrb[0].mxu0 %v114
    %v185 = vpop.f32.mrb[0].mxu0
    %v186 = vadd.f32 %v111, %v185
    %v187 = vpop.f32.mrb[0].mxu0
    %188 = vmatprep.mubr.f32.mxu0 0.0
    %189 = vmatmul.mubr.f32.gmra.mrb[0].mxu0 %v117
    %v190 = vpop.f32.mrb[0].mxu0
    %v191 = vadd.f32 %v111, %v190
    %v192 = vpop.f32.mrb[0].mxu0
    %193 = vdwg.mxu0
    %194 = vst.msk [vmem:[#allocation8] sm:$0xff] %vm56, %v186
    %195 = vst.msk [vmem:[#allocation8 + $0x8] sm:$0xff] %vm56, %v191
    // Predicated region
    $region30: #{tpu_custom_call.1} parent=1 // pred_check
      _
    $region31: #{tpu_custom_call.1} parent=1 // pred_check_branch
      %197 = sbr.rel (0) target = $region33
    $region32: #{tpu_custom_call.1} parent=1 // pred_region
      %s199 = ssub.s32 256, 256
      %200 = vsyncadd [#allocation4], %s199
      %s201 = sshll.u32 [#allocation7], 4
      %s202 = int_to_ptr.vmem [resolvable:$true] %s201
      %207 = dma.vmem_to_hbm [thread:$0]  %s202, 256, %s5, [#allocation4], 128, 128, 8
    $region33: #{tpu_custom_call.1} parent=1 // pred_fallthru
      _
    // Predicated region
    $region34: #{tpu_custom_call.1} parent=1 // pred_check
      _
    $region35: #{tpu_custom_call.1} parent=1 // pred_check_branch
      %209 = sbr.rel (0) target = $region37
    $region36: #{tpu_custom_call.1} parent=1 // pred_region
      %s211 = ssub.s32 256, 256
      %212 = vsyncadd [#allocation9], %s211
      %s213 = sshll.u32 [#allocation8], 4
      %s214 = int_to_ptr.vmem [resolvable:$true] %s213
      %219 = dma.vmem_to_hbm [thread:$0]  %s214, 256, %s6, [#allocation9], 128, 128, 8
    $region37: #{tpu_custom_call.1} parent=1 // pred_fallthru
      _
    // Predicated region
    $region38: #{tpu_custom_call.1} parent=1 // pred_check
      _
    $region39: #{tpu_custom_call.1} parent=1 // pred_check_branch
      %221 = sbr.rel (0) target = $region41
    $region40: #{tpu_custom_call.1} parent=1 // pred_region
      %222 = dma.done [#allocation4], 256
    $region41: #{tpu_custom_call.1} parent=1 // pred_fallthru
      _
    // Predicated region
    $region42: #{tpu_custom_call.1} parent=1 // pred_check
      _
    $region43: #{tpu_custom_call.1} parent=1 // pred_check_branch
      %224 = sbr.rel (0) target = $region45
    $region44: #{tpu_custom_call.1} parent=1 // pred_region
      %225 = dma.done [#allocation9], 256
    $region45: #{tpu_custom_call.1} parent=1 // pred_fallthru
      _
    %226 = vsyncpa [#allocation3], 1
    %227 = vsyncpa [#allocation6], 1
    %228 = vsyncpa [#allocation4], 1
    %229 = vsyncpa [#allocation9], 1

</llo_original>
